<compile_context>
chip_gen: v7x
topology: tpu7x:2x2x1
jax: 0.10.0
libtpu: 0.0.40
codegen_flags: <defaults>
</compile_context>

<pallas_src>
import functools

import jax
import jax.numpy as jnp
from jax import lax
from jax.experimental import pallas as pl
from jax.experimental.pallas import tpu as pltpu

_LANE = 128


def _round_up(v, m):
    return (v + m - 1) // m * m


def _param_layout(d_in, d_h1, d_h2, d_out):
    """Column offsets of W1,b1,W2,b2,W3,b3 inside the packed params slab."""
    c_w1 = 0
    c_b1 = _round_up(c_w1 + d_in, 8)
    c_w2 = _round_up(c_b1 + 1, 8)
    c_b2 = _round_up(c_w2 + d_h1, 8)
    c_w3 = _round_up(c_b2 + 1, 8)
    c_b3 = _round_up(c_w3 + d_h2, 8)
    cols = _round_up(c_b3 + 1, _LANE)
    rows = _round_up(max(d_h1, d_h2, d_out), 8)
    return (c_w1, c_b1, c_w2, c_b2, c_w3, c_b3), rows, cols


def _pack_params(w1, b1, w2, b2, w3, b3):
    """Pack all six tiny parameter tensors into one (rows, 128) f32 array -> one DMA."""
    d_h1, d_in = w1.shape
    d_h2 = w2.shape[0]
    d_out = w3.shape[0]
    (c_w1, c_b1, c_w2, c_b2, c_w3, c_b3), rows, cols = _param_layout(d_in, d_h1, d_h2, d_out)
    p = jnp.zeros((rows, cols), jnp.float32)
    p = p.at[:d_h1, c_w1:c_w1 + d_in].set(w1.astype(jnp.float32))
    p = p.at[:d_h1, c_b1].set(b1.astype(jnp.float32))
    p = p.at[:d_h2, c_w2:c_w2 + d_h1].set(w2.astype(jnp.float32))
    p = p.at[:d_h2, c_b2].set(b2.astype(jnp.float32))
    p = p.at[:d_out, c_w3:c_w3 + d_h2].set(w3.astype(jnp.float32))
    p = p.at[:d_out, c_b3].set(b3.astype(jnp.float32))
    return p


def _mlp_kernel(x_ref, p_ref, out_ref, *, dims, chunk):
    """relu(W1 x + b1) -> relu(W2 . + b2) -> sigmoid(W3 . + b3), batch on lanes."""
    d_in, d_h1, d_h2, d_out = dims
    (c_w1, c_b1, c_w2, c_b2, c_w3, c_b3), _, _ = _param_layout(d_in, d_h1, d_h2, d_out)

    # Unpack the packed parameter slab once per grid step (tiny, static slices).
    w1 = p_ref[:d_h1, c_w1:c_w1 + d_in]           # [d_h1, d_in]
    b1 = p_ref[:d_h1, c_b1:c_b1 + 1]              # [d_h1, 1]
    w2 = p_ref[:d_h2, c_w2:c_w2 + d_h1]           # [d_h2, d_h1]
    b2 = p_ref[:d_h2, c_b2:c_b2 + 1]              # [d_h2, 1]
    w3 = p_ref[:d_out, c_w3:c_w3 + d_h2]          # [d_out, d_h2]
    b3 = p_ref[:d_out, c_b3:c_b3 + 1]             # [d_out, 1]

    blk = x_ref.shape[1]
    n_chunks = blk // chunk

    # Hoist bias broadcasts out of the chunk loop (JAX doesn't CSE broadcast_in_dim).
    b1_b = jnp.broadcast_to(b1, (d_h1, chunk))
    b2_b = jnp.broadcast_to(b2, (d_h2, chunk))
    b3_b = jnp.broadcast_to(b3, (d_out, chunk))

    def body(c, carry):
        start = pl.multiple_of(c * chunk, _LANE)
        x = x_ref[:, pl.ds(start, chunk)]                           # [d_in, chunk]

        # Layer 1 (K = d_in = 2): unrolled broadcast-FMA on the VPU.
        h1 = w1[:, 0:1] * x[0:1, :]
        for k in range(1, d_in):
            h1 = h1 + w1[:, k:k + 1] * x[k:k + 1, :]
        h1 = jnp.maximum(h1 + b1_b, 0.0)                            # [d_h1, chunk]

        # Layers 2/3 (K = 16 / 8): route through the otherwise-idle MXU to
        # avoid per-k lane/sublane broadcasts loading the XLU.
        h2 = jnp.dot(w2, h1, preferred_element_type=jnp.float32) + b2_b
        h2 = jnp.maximum(h2, 0.0)                                   # [d_h2, chunk]
        z = jnp.dot(w3, h2, preferred_element_type=jnp.float32) + b3_b

        # sigmoid(z) = 1 / (1 + exp(-z)); clamp keeps exp finite, exp + approx
        # reciprocal both ride the otherwise-idle EUP slot.
        z = jnp.clip(z, -60.0, 60.0)
        out_ref[:, pl.ds(start, chunk)] = pl.reciprocal(1.0 + jnp.exp(-z), approx=True)
        return carry

    lax.fori_loop(0, n_chunks, body, 0, unroll=True)


@functools.partial(jax.jit, static_argnames=("block_n", "inner_chunk"))
def mlp_forward(x, w1, b1, w2, b2, w3, b3, *, block_n=4096, inner_chunk=512):
    """Pallas-fused MLP forward.

    x:  [N, d_in] f32; wK: [out_k, in_k] f32 (PyTorch nn.Linear layout); bK: [out_k].
    Returns [N, d_out] f32.
    """
    if block_n <= 0 or block_n % _LANE != 0:
        raise ValueError("block_n must be a positive multiple of 128")
    if inner_chunk <= 0 or inner_chunk % _LANE != 0:
        raise ValueError("inner_chunk must be a positive multiple of 128")

    n, d_in = x.shape
    d_h1 = w1.shape[0]
    d_h2 = w2.shape[0]
    d_out = w3.shape[0]
    dims = (d_in, d_h1, d_h2, d_out)

    # ---- lane tiling: choose grid length first, then derive the tile width ----
    lanes_total = pl.cdiv(n, _LANE)              # batch measured in 128-lane groups
    g = pl.cdiv(lanes_total, block_n // _LANE)   # grid steps at the requested cap
    if g == 1 and lanes_total >= 2:
        g = 2                                    # v7x: >=2 tiles so both TCs get work
    blk_lanes = pl.cdiv(lanes_total, g)
    blk = blk_lanes * _LANE
    n_pad = g * blk

    # In-kernel chunk: largest lane count <= inner_chunk that divides the tile,
    # keeping h1/h2 inside the vreg file even when blk is large.
    max_cl = max(1, min(inner_chunk // _LANE, blk_lanes))
    chunk_lanes = max(c for c in range(1, max_cl + 1) if blk_lanes % c == 0)
    chunk = chunk_lanes * _LANE

    # Channels-first, lane-dense batch layout; single pad op.
    # TODO(synk): accept/return a channels-first [d_in, N] layout from the caller
    # to drop these wrapper transposes entirely for the latency-bound N=100 case.
    x_t = jnp.pad(x.T.astype(jnp.float32), ((0, 0), (0, n_pad - n)))
    params = _pack_params(w1, b1, w2, b2, w3, b3)
    _, p_rows, p_cols = _param_layout(*dims)

    kernel = functools.partial(_mlp_kernel, dims=dims, chunk=chunk)

    out_t = pl.pallas_call(
        kernel,
        out_shape=jax.ShapeDtypeStruct((d_out, n_pad), jnp.float32),
        grid_spec=pltpu.PrefetchScalarGridSpec(
            num_scalar_prefetch=0,
            grid=(g,),
            in_specs=[
                pl.BlockSpec((d_in, blk), lambda i: (0, i)),       # x tile, batch on lanes
                pl.BlockSpec((p_rows, p_cols), lambda i: (0, 0)),  # packed params (one DMA)
            ],
            out_specs=pl.BlockSpec((d_out, blk), lambda i: (0, i)),
        ),
        compiler_params=pltpu.CompilerParams(
            dimension_semantics=("parallel",),   # lets v7x shard tiles across its 2 TCs
        ),
    )(x_t, params)

    return out_t[:, :n].T


def init_linear_params(key, in_dim, out_dim):
    """Deterministic init mirroring nn.Linear's U(-1/sqrt(in), 1/sqrt(in))."""
    k_w, k_b = jax.random.split(key)
    bound = 1.0 / jnp.sqrt(jnp.float32(in_dim))
    w = jax.random.uniform(k_w, (out_dim, in_dim), jnp.float32, -bound, bound)  # [out, in]
    b = jax.random.uniform(k_b, (out_dim,), jnp.float32, -bound, bound)
    return w, b


def mlp_reference(x, w1, b1, w2, b2, w3, b3):
    h1 = jax.nn.relu(x @ w1.T + b1)
    h2 = jax.nn.relu(h1 @ w2.T + b2)
    return jax.nn.sigmoid(h2 @ w3.T + b3)


if __name__ == "__main__":
    input_dim, hidden1, hidden2, output_dim = 2, 16, 8, 2
    batch = 100  # matches `data = torch.randn(100, 2)`

    root = jax.random.PRNGKey(0)
    k_x, k_l1, k_l2, k_l3, k_x2 = jax.random.split(root, 5)

    x = jax.random.normal(k_x, (batch, input_dim), jnp.float32)
    w1, b1 = init_linear_params(k_l1, input_dim, hidden1)
    w2, b2 = init_linear_params(k_l2, hidden1, hidden2)
    w3, b3 = init_linear_params(k_l3, hidden2, output_dim)

    # Latency case: N=100 -> single 128-lane grid step.
    out = jax.block_until_ready(mlp_forward(x, w1, b1, w2, b2, w3, b3))
    ref = mlp_reference(x, w1, b1, w2, b2, w3, b3)
    assert out.shape == (batch, output_dim), out.shape
    # Tolerance covers the EUP approximate reciprocal (~1e-4 rel) in the sigmoid.
    assert jnp.allclose(out, ref, atol=1e-2, rtol=1e-2), "mismatch vs reference (N=100)"

    # Throughput case: exercises the multi-tile grid (g>=2) and the in-kernel chunk loop.
    batch2 = 1200
    x2 = jax.random.normal(k_x2, (batch2, input_dim), jnp.float32)
    out2 = jax.block_until_ready(mlp_forward(x2, w1, b1, w2, b2, w3, b3))
    ref2 = mlp_reference(x2, w1, b1, w2, b2, w3, b3)
    assert out2.shape == (batch2, output_dim), out2.shape
    assert jnp.allclose(out2, ref2, atol=1e-2, rtol=1e-2), "mismatch vs reference (N=1200)"

    print("KERNEL_OK")
</pallas_src>

<mosaic_0001>
module attributes {stable_mosaic.version = 11 : i64} {
  func.func @_mlp_kernel(%arg0: i32, %arg1: memref<2x128xf32, #tpu.memory_space<vmem>>, %arg2: memref<16x128xf32, #tpu.memory_space<vmem>>, %arg3: memref<2x128xf32, #tpu.memory_space<vmem>>) attributes {dimension_semantics = [#tpu.dimension_semantics<parallel>], iteration_bounds = array<i64: 1>, scalar_prefetch = 0 : i64, scratch_operands = 0 : i64, tpu.core_type = #tpu.core_type<tc>, window_params = [{transform_indices = @transform_0, window_bounds = array<i64: 2, 128>}, {pipeline_mode = #tpu.pipeline_mode<synchronous>, transform_indices = @transform_1, window_bounds = array<i64: 16, 128>}, {transform_indices = @transform_2, window_bounds = array<i64: 2, 128>}]} {
    %c0 = arith.constant 0 : index
    %c0_0 = arith.constant 0 : index
    %0 = vector.load %arg2[%c0, %c0_0] : memref<16x128xf32, #tpu.memory_space<vmem>>, vector<16x2xf32>
    %c0_1 = arith.constant 0 : index
    %c8 = arith.constant 8 : index
    %1 = vector.load %arg2[%c0_1, %c8] : memref<16x128xf32, #tpu.memory_space<vmem>>, vector<16x1xf32>
    %c0_2 = arith.constant 0 : index
    %c16 = arith.constant 16 : index
    %2 = vector.load %arg2[%c0_2, %c16] : memref<16x128xf32, #tpu.memory_space<vmem>>, vector<8x16xf32>
    %c0_3 = arith.constant 0 : index
    %c32 = arith.constant 32 : index
    %3 = vector.load %arg2[%c0_3, %c32] : memref<16x128xf32, #tpu.memory_space<vmem>>, vector<8x1xf32>
    %c0_4 = arith.constant 0 : index
    %c40 = arith.constant 40 : index
    %4 = vector.load %arg2[%c0_4, %c40] : memref<16x128xf32, #tpu.memory_space<vmem>>, vector<2x8xf32>
    %c0_5 = arith.constant 0 : index
    %c48 = arith.constant 48 : index
    %5 = vector.load %arg2[%c0_5, %c48] : memref<16x128xf32, #tpu.memory_space<vmem>>, vector<2x1xf32>
    %6 = vector.shape_cast %1 : vector<16x1xf32> to vector<16x1xf32>
    %7 = vector.broadcast %6 : vector<16x1xf32> to vector<16x128xf32>
    %8 = vector.shape_cast %3 : vector<8x1xf32> to vector<8x1xf32>
    %9 = vector.broadcast %8 : vector<8x1xf32> to vector<8x128xf32>
    %10 = vector.shape_cast %5 : vector<2x1xf32> to vector<2x1xf32>
    %11 = vector.broadcast %10 : vector<2x1xf32> to vector<2x128xf32>
    %c0_i32 = arith.constant 0 : i32
    %c128_i32 = arith.constant 128 : i32
    %12 = arith.muli %c0_i32, %c128_i32 : i32
    %13 = tpu.assume_multiple %12, 128 : i32
    %c0_6 = arith.constant 0 : index
    %14 = arith.index_cast %13 : i32 to index
    %15 = vector.load %arg1[%c0_6, %14] : memref<2x128xf32, #tpu.memory_space<vmem>>, vector<2x128xf32>
    %16 = vector.extract_strided_slice %0 {offsets = [0, 0], sizes = [16, 1], strides = [1, 1]} : vector<16x2xf32> to vector<16x1xf32>
    %17 = vector.extract_strided_slice %15 {offsets = [0, 0], sizes = [1, 128], strides = [1, 1]} : vector<2x128xf32> to vector<1x128xf32>
    %18 = vector.broadcast %16 : vector<16x1xf32> to vector<16x128xf32>
    %19 = vector.broadcast %17 : vector<1x128xf32> to vector<16x128xf32>
    %20 = arith.mulf %18, %19 : vector<16x128xf32>
    %21 = vector.extract_strided_slice %0 {offsets = [0, 1], sizes = [16, 1], strides = [1, 1]} : vector<16x2xf32> to vector<16x1xf32>
    %22 = vector.extract_strided_slice %15 {offsets = [1, 0], sizes = [1, 128], strides = [1, 1]} : vector<2x128xf32> to vector<1x128xf32>
    %23 = vector.broadcast %21 : vector<16x1xf32> to vector<16x128xf32>
    %24 = vector.broadcast %22 : vector<1x128xf32> to vector<16x128xf32>
    %25 = arith.mulf %23, %24 : vector<16x128xf32>
    %26 = arith.addf %20, %25 : vector<16x128xf32>
    %27 = arith.addf %26, %7 : vector<16x128xf32>
    %cst = arith.constant 0.000000e+00 : f32
    %28 = vector.broadcast %cst : f32 to vector<16x128xf32>
    %29 = arith.maximumf %27, %28 : vector<16x128xf32>
    %cst_7 = arith.constant dense<0.000000e+00> : vector<8x128xf32>
    %30 = tpu.matmul %2, %29, %cst_7 {dimension_numbers = #tpu.dot_dimension_numbers<[1], [0], [0], [1], [0, 0, 1, 1], [], []>} : vector<8x16xf32>, vector<16x128xf32>, vector<8x128xf32> -> vector<8x128xf32>
    %31 = arith.addf %30, %9 : vector<8x128xf32>
    %cst_8 = arith.constant 0.000000e+00 : f32
    %32 = vector.broadcast %cst_8 : f32 to vector<8x128xf32>
    %33 = arith.maximumf %31, %32 : vector<8x128xf32>
    %cst_9 = arith.constant dense<0.000000e+00> : vector<2x128xf32>
    %34 = tpu.matmul %4, %33, %cst_9 {dimension_numbers = #tpu.dot_dimension_numbers<[1], [0], [0], [1], [0, 0, 1, 1], [], []>} : vector<2x8xf32>, vector<8x128xf32>, vector<2x128xf32> -> vector<2x128xf32>
    %35 = arith.addf %34, %11 : vector<2x128xf32>
    %cst_10 = arith.constant -6.000000e+01 : f32
    %cst_11 = arith.constant 6.000000e+01 : f32
    %36 = vector.broadcast %cst_10 : f32 to vector<2x128xf32>
    %37 = arith.maximumf %36, %35 : vector<2x128xf32>
    %38 = vector.broadcast %cst_11 : f32 to vector<2x128xf32>
    %39 = arith.minimumf %38, %37 : vector<2x128xf32>
    %cst_12 = arith.constant 0.000000e+00 : f32
    %40 = vector.broadcast %cst_12 : f32 to vector<2x128xf32>
    %41 = arith.subf %40, %39 : vector<2x128xf32>
    %42 = math.exp %41 : vector<2x128xf32>
    %cst_13 = arith.constant 1.000000e+00 : f32
    %43 = vector.broadcast %cst_13 : f32 to vector<2x128xf32>
    %44 = arith.addf %43, %42 : vector<2x128xf32>
    %45 = tpu.reciprocal %44 {approx = true} : vector<2x128xf32> -> vector<2x128xf32>
    %c0_14 = arith.constant 0 : index
    %46 = arith.index_cast %13 : i32 to index
    %47 = vector.load %arg3[%c0_14, %46] : memref<2x128xf32, #tpu.memory_space<vmem>>, vector<2x128xf32>
    tpu.vector_store %arg3[%c0_14, %46], %45 {strides = array<i32>} : memref<2x128xf32, #tpu.memory_space<vmem>>, vector<2x128xf32>,
    %c1_i32 = arith.constant 1 : i32
    return
  }
  func.func @transform_0(%arg0: i32) -> (i32, i32) {
    %c0_i32 = arith.constant 0 : i32
    %c0_i32_0 = arith.constant 0 : i32
    return %c0_i32, %arg0 : i32, i32
  }
  func.func @transform_1(%arg0: i32) -> (i32, i32) {
    %c0_i32 = arith.constant 0 : i32
    %c0_i32_0 = arith.constant 0 : i32
    %c0_i32_1 = arith.constant 0 : i32
    return %c0_i32, %c0_i32_0 : i32, i32
  }
  func.func @transform_2(%arg0: i32) -> (i32, i32) {
    %c0_i32 = arith.constant 0 : i32
    %c0_i32_0 = arith.constant 0 : i32
    return %c0_i32, %arg0 : i32, i32
  }
}

</mosaic_0001>

<llo_original>
// kernel: mlp_forward.1
$region0: #{mlp_forward.1}
  #allocation0 [shape = 'u32[]', space=smem, size = 0x4, offset = 0x4, fixed_abs, tag = 'smem constant byte address 0x4 - core index']
  #allocation1 [shape = 'u32[144,128]{1,0:T(1,128)}', space=vmem, size = 0x12000, scoped, tag = 'internal scratch']
  %s0 = inlined_call_operand.vmem [shape: f32[2,128], index: 0, kind: input, shape index: {}]
  %s1 = inlined_call_operand.vmem [shape: f32[16,128], index: 1, kind: input, shape index: {}]
  %s2 = inlined_call_operand.vmem [shape: f32[2,128], index: 2, kind: output, shape index: {}]
  %s3 = sld [smem:[#allocation0]]
  $region18: #{mlp_forward.1} parent=0
    _
  %s5 = ssub.s32 1, %s3
  %s6 = scalar_select 0, %s5, %s3
  // Predicated region
  $region2: #{mlp_forward.1} parent=0 // pred_check
    _
  $region3: #{mlp_forward.1} parent=0 // pred_check_branch
    %8 = sbr.rel (0) target = $region5
  $region4: #{mlp_forward.1} parent=0 // pred_region
    _
  $region5: #{mlp_forward.1} parent=0 // pred_fallthru
    _
  // Predicated region
  $region6: #{mlp_forward.1} parent=0 // pred_check
    _
  $region7: #{mlp_forward.1} parent=0 // pred_check_branch
    %10 = sbr.rel (0) target = $region9
  $region8: #{mlp_forward.1} parent=0 // pred_region
    _
  $region9: #{mlp_forward.1} parent=0 // pred_fallthru
    _
  %v11 = vld [vmem:[%s1] sm:$0xff]
  %v12 = vld [vmem:[%s1 + $0x8] sm:$0xff]
  %v13 = vld [vmem:[%s1] sm:$0xff]
  %v14 = vld [vmem:[%s1] sm:$0x3]
  %16 = vset.pattern.permute.xlu0 8
  %17 = vperm.xlu0 %16, %v11
  %v18 = vpop.permute.xlu0 %17
  %21 = vset.pattern.permute.xlu0 8
  %22 = vperm.xlu0 %21, %v12
  %v23 = vpop.permute.xlu0 %22
  %26 = vset.pattern.permute.xlu0 32
  %27 = vperm.xlu0 %26, %v13
  %v28 = vpop.permute.xlu0 %27
  %31 = vset.pattern.permute.xlu0 48
  %32 = vperm.xlu0 %31, %v14
  %v33 = vpop.permute.xlu0 %32
  %v35 = vld [vmem:[%s0] sm:$0x3]
  %36 = vset.pattern.permute.xlu0 0
  %37 = vperm.xlu0 %36, %v11
  %v38 = vpop.permute.xlu0 %37
  %40 = vset.pattern.permute.xlu0 0
  %41 = vperm.xlu0 %40, %v12
  %v42 = vpop.permute.xlu0 %41
  %v44 = vlaneseq
  %v45 = vshrl.u32 %v44, 7
  %v46 = vsub.s32 0, %v45
  %v47 = vrot.slane %v35, %v46
  %v48 = vmul.f32 %v38, %v47
  %v49 = vmul.f32 %v42, %v47
  %50 = vset.pattern.permute.xlu0 1
  %51 = vperm.xlu0 %50, %v11
  %v52 = vpop.permute.xlu0 %51
  %54 = vset.pattern.permute.xlu0 1
  %55 = vperm.xlu0 %54, %v12
  %v56 = vpop.permute.xlu0 %55
  %v58 = vlaneseq
  %v59 = vshrl.u32 %v58, 7
  %v60 = vsub.s32 1, %v59
  %v61 = vrot.slane %v35, %v60
  %v62 = vmul.f32 %v52, %v61
  %v63 = vmul.f32 %v56, %v61
  %v64 = vadd.f32 %v48, %v62
  %v65 = vadd.f32 %v49, %v63
  %v66 = vadd.f32 %v64, %v18
  %v67 = vadd.f32 %v65, %v23
  %v68 = vmax.f32 %v66, 0.0
  %v69 = vmax.f32 %v67, 0.0
  %70 = vrot.lane.b32.xlu0 %v13, 112
  %v71 = vpop.permute.xlu0 %70
  %vm72 = vcmask 130048
  %v73 = vsel %vm72, %v71, 0
  %75 = vmatprep.subr.mxu0 0.0
  %76 = vmatpush1.msra.mxu0 %v68
  %77 = vmatprep.subr.mxu0 0.0
  %78 = vmatpush1.msra.mxu0 %v69
  %79 = vmatprep.subr.mxu0 0.0
  %80 = vmatpush1.msra.mxu0 0.0
  %81 = vmatprep.subr.mxu0 0.0
  %82 = vmatpush1.msra.mxu0 0.0
  %83 = vmatprep.subr.mxu0 0.0
  %84 = vmatpush1.msra.mxu0 0.0
  %85 = vmatprep.subr.mxu0 0.0
  %86 = vmatpush1.msra.mxu0 0.0
  %87 = vmatprep.subr.mxu0 0.0
  %88 = vmatpush1.msra.mxu0 0.0
  %89 = vmatprep.subr.mxu0 0.0
  %90 = vmatpush1.msra.mxu0 0.0
  %91 = vmatprep.subr.mxu0 0.0
  %92 = vmatpush1.msra.mxu0 0.0
  %93 = vmatprep.subr.mxu0 0.0
  %94 = vmatpush1.msra.mxu0 0.0
  %95 = vmatprep.subr.mxu0 0.0
  %96 = vmatpush1.msra.mxu0 0.0
  %97 = vmatprep.subr.mxu0 0.0
  %98 = vmatpush1.msra.mxu0 0.0
  %99 = vmatprep.subr.mxu0 0.0
  %100 = vmatpush1.msra.mxu0 0.0
  %101 = vmatprep.subr.mxu0 0.0
  %102 = vmatpush1.msra.mxu0 0.0
  %103 = vmatprep.subr.mxu0 0.0
  %104 = vmatpush1.msra.mxu0 0.0
  %105 = vmatprep.subr.mxu0 0.0
  %106 = vmatpush1.msra.mxu0 0.0
  %107 = vmatprep.subr.mxu0 0.0
  %108 = vmatpush1.msra.mxu0 0.0
  %109 = vmatprep.subr.mxu0 0.0
  %110 = vmatpush1.msra.mxu0 0.0
  %111 = vmatprep.subr.mxu0 0.0
  %112 = vmatpush1.msra.mxu0 0.0
  %113 = vmatprep.subr.mxu0 0.0
  %114 = vmatpush1.msra.mxu0 0.0
  %115 = vmatprep.subr.mxu0 0.0
  %116 = vmatpush1.msra.mxu0 0.0
  %117 = vmatprep.subr.mxu0 0.0
  %118 = vmatpush1.msra.mxu0 0.0
  %119 = vmatprep.subr.mxu0 0.0
  %120 = vmatpush1.msra.mxu0 0.0
  %121 = vmatprep.subr.mxu0 0.0
  %122 = vmatpush1.msra.mxu0 0.0
  %123 = vmatprep.subr.mxu0 0.0
  %124 = vmatpush1.msra.mxu0 0.0
  %125 = vmatprep.subr.mxu0 0.0
  %126 = vmatpush1.msra.mxu0 0.0
  %127 = vmatprep.subr.mxu0 0.0
  %128 = vmatpush1.msra.mxu0 0.0
  %129 = vmatprep.subr.mxu0 0.0
  %130 = vmatpush1.msra.mxu0 0.0
  %131 = vmatprep.subr.mxu0 0.0
  %132 = vmatpush1.msra.mxu0 0.0
  %133 = vmatprep.subr.mxu0 0.0
  %134 = vmatpush1.msra.mxu0 0.0
  %135 = vmatprep.subr.mxu0 0.0
  %136 = vmatpush1.msra.mxu0 0.0
  %137 = vmatprep.subr.mxu0 0.0
  %138 = vmatpush1.msra.mxu0 0.0
  %139 = vmatprep.mubr.f32.mxu0 0.0
  %140 = vmatmul.mubr.f32.gmra.mrb[0].mxu0 %v73
  %v141 = vpop.f32.mrb[0].mxu0
  %v142 = vadd.f32 %v28, %v141
  %v143 = vpop.f32.mrb[0].mxu0
  %144 = vdwg.mxu0
  %v145 = vmax.f32 %v142, 0.0
  %146 = vrot.lane.b32.xlu0 %v14, 88
  %v147 = vpop.permute.xlu0 %146
  %vm148 = vcmask 64512
  %v149 = vsel %vm148, %v147, 0
  %151 = vmatprep.subr.mxu0 0.0
  %152 = vmatpush1.msra.mxu0 %v145
  %153 = vmatprep.subr.mxu0 0.0
  %154 = vmatpush1.msra.mxu0 0.0
  %155 = vmatprep.subr.mxu0 0.0
  %156 = vmatpush1.msra.mxu0 0.0
  %157 = vmatprep.subr.mxu0 0.0
  %158 = vmatpush1.msra.mxu0 0.0
  %159 = vmatprep.subr.mxu0 0.0
  %160 = vmatpush1.msra.mxu0 0.0
  %161 = vmatprep.subr.mxu0 0.0
  %162 = vmatpush1.msra.mxu0 0.0
  %163 = vmatprep.subr.mxu0 0.0
  %164 = vmatpush1.msra.mxu0 0.0
  %165 = vmatprep.subr.mxu0 0.0
  %166 = vmatpush1.msra.mxu0 0.0
  %167 = vmatprep.subr.mxu0 0.0
  %168 = vmatpush1.msra.mxu0 0.0
  %169 = vmatprep.subr.mxu0 0.0
  %170 = vmatpush1.msra.mxu0 0.0
  %171 = vmatprep.subr.mxu0 0.0
  %172 = vmatpush1.msra.mxu0 0.0
  %173 = vmatprep.subr.mxu0 0.0
  %174 = vmatpush1.msra.mxu0 0.0
  %175 = vmatprep.subr.mxu0 0.0
  %176 = vmatpush1.msra.mxu0 0.0
  %177 = vmatprep.subr.mxu0 0.0
  %178 = vmatpush1.msra.mxu0 0.0
  %179 = vmatprep.subr.mxu0 0.0
  %180 = vmatpush1.msra.mxu0 0.0
  %181 = vmatprep.subr.mxu0 0.0
  %182 = vmatpush1.msra.mxu0 0.0
  %183 = vmatprep.subr.mxu0 0.0
  %184 = vmatpush1.msra.mxu0 0.0
  %185 = vmatprep.subr.mxu0 0.0
  %186 = vmatpush1.msra.mxu0 0.0
  %187 = vmatprep.subr.mxu0 0.0
  %188 = vmatpush1.msra.mxu0 0.0
  %189 = vmatprep.subr.mxu0 0.0
  %190 = vmatpush1.msra.mxu0 0.0
  %191 = vmatprep.subr.mxu0 0.0
  %192 = vmatpush1.msra.mxu0 0.0
  %193 = vmatprep.subr.mxu0 0.0
  %194 = vmatpush1.msra.mxu0 0.0
  %195 = vmatprep.subr.mxu0 0.0
  %196 = vmatpush1.msra.mxu0 0.0
  %197 = vmatprep.subr.mxu0 0.0
  %198 = vmatpush1.msra.mxu0 0.0
  %199 = vmatprep.subr.mxu0 0.0
  %200 = vmatpush1.msra.mxu0 0.0
  %201 = vmatprep.subr.mxu0 0.0
  %202 = vmatpush1.msra.mxu0 0.0
  %203 = vmatprep.subr.mxu0 0.0
  %204 = vmatpush1.msra.mxu0 0.0
  %205 = vmatprep.subr.mxu0 0.0
  %206 = vmatpush1.msra.mxu0 0.0
  %207 = vmatprep.subr.mxu0 0.0
  %208 = vmatpush1.msra.mxu0 0.0
  %209 = vmatprep.subr.mxu0 0.0
  %210 = vmatpush1.msra.mxu0 0.0
  %211 = vmatprep.subr.mxu0 0.0
  %212 = vmatpush1.msra.mxu0 0.0
  %213 = vmatprep.subr.mxu0 0.0
  %214 = vmatpush1.msra.mxu0 0.0
  %215 = vmatprep.mubr.f32.mxu0 0.0
  %216 = vmatmul.mubr.f32.gmra.mrb[0].mxu0 %v149
  %v217 = vpop.f32.mrb[0].mxu0
  %v218 = vadd.f32 %v33, %v217
  %v219 = vpop.f32.mrb[0].mxu0
  %220 = vdwg.mxu0
  %v221 = vmax.f32 %v218, -60.0
  %v222 = vmin.f32 %v221, 60.0
  %v223 = vsub.f32 0.0, %v222
  %v224 = vmul.f32 %v223, 1.442695
  %v225 = vpow.pop %v224
  %v226 = vadd.f32 %v225, 1.0
  %v227 = vrcp.pop %v226
  %228 = vst [vmem:[%s2] sm:$0x3] %v227
  // Predicated region
  $region10: #{mlp_forward.1} parent=0 // pred_check
    _
  $region11: #{mlp_forward.1} parent=0 // pred_check_branch
    %230 = sbr.rel (0) target = $region13
  $region12: #{mlp_forward.1} parent=0 // pred_region
    _
  $region13: #{mlp_forward.1} parent=0 // pred_fallthru
    _
  // Predicated region
  $region14: #{mlp_forward.1} parent=0 // pred_check
    _
  $region15: #{mlp_forward.1} parent=0 // pred_check_branch
    %232 = sbr.rel (0) target = $region17
  $region16: #{mlp_forward.1} parent=0 // pred_region
    _
  $region17: #{mlp_forward.1} parent=0 // pred_fallthru
    _

</llo_original>
